<compile_context>
chip_gen: v7x
topology: tpu7x:2x2x1
jax: 0.10.0
libtpu: 0.0.40
codegen_flags: <defaults>
</compile_context>

<pallas_src>
import math

import numpy as np
import jax
import jax.numpy as jnp
from jax.experimental import pallas as pl
from jax.experimental.pallas import tpu as pltpu


_LANE = 128                      # TPU vreg lane width
_LANE_MAX = 2048                 # target lane-dense block width (multiple of 128)
_BLOCK_BYTES = 4 * 1024 * 1024   # <=4 MiB blocks -> ~16 MiB pipeline footprint
_VMEM_LIMIT = 32 * 1024 * 1024   # explicit scoped-VMEM budget, safe on v5e/v6e/v7x


def _copy_kernel(x_ref, o_ref):
    # Identity copy of the current (r_tile, lane) block.
    o_ref[...] = x_ref[...]


def _resolve_view_shape(total_elems, shape):
    """Replicate torch.Tensor.view shape resolution (single -1 allowed)."""
    shape = list(shape)
    neg = [i for i, s in enumerate(shape) if s == -1]
    if len(neg) > 1:
        raise ValueError("only one dimension can be inferred")
    if neg:
        known = 1
        for i, s in enumerate(shape):
            if i != neg[0]:
                known *= int(s)
        shape[neg[0]] = total_elems // known
    if int(np.prod(shape)) != total_elems:
        raise ValueError(f"shape {tuple(shape)} is invalid for input of size {total_elems}")
    return tuple(int(s) for s in shape)


def _choose_tiling(total, itemsize):
    """Shape-agnostic (rows, lane, r_tile) tiling for an identity copy.

    `total` must be a multiple of 128.  lane is the largest multiple of 128
    (capped at _LANE_MAX) that divides total; r_tile is a multiple of the
    dtype's sublane packing so blocks stay on the unmasked full-vreg path;
    block bytes stay under _BLOCK_BYTES.
    """
    assert total % _LANE == 0
    lane = _LANE * math.gcd(total // _LANE, _LANE_MAX // _LANE)
    rows = total // lane
    pack = 8 * max(1, 4 // itemsize)   # 8 (f32/i32), 16 (bf16), 32 (i8/fp8)
    max_rows = max(pack, (_BLOCK_BYTES // (lane * itemsize)) // pack * pack)
    r_tile = rows if rows <= max_rows else max_rows
    return rows, lane, r_tile


def _pallas_identity_copy(flat):
    """Tiled HBM->VMEM->HBM identity copy of a 1-D array (benchmark path)."""
    total = int(flat.shape[0])
    itemsize = flat.dtype.itemsize

    # Pad ragged totals up to a lane multiple so we never emit a single
    # whole-array block (which would exceed VMEM for large unaligned inputs).
    pad = (-total) % _LANE
    padded = jnp.pad(flat, (0, pad)) if pad else flat

    rows, lane, r_tile = _choose_tiling(total + pad, itemsize)
    flat2d = jnp.reshape(padded, (rows, lane))

    grid = (pl.cdiv(rows, r_tile),)
    out2d = pl.pallas_call(
        _copy_kernel,
        out_shape=jax.ShapeDtypeStruct((rows, lane), flat.dtype),
        grid_spec=pltpu.PrefetchScalarGridSpec(
            num_scalar_prefetch=0,
            grid=grid,
            in_specs=[pl.BlockSpec((r_tile, lane), lambda i: (i, 0))],
            out_specs=pl.BlockSpec((r_tile, lane), lambda i: (i, 0)),
        ),
        compiler_params=pltpu.CompilerParams(
            # Row-tile axis is embarrassingly parallel; on v7x both TCs copy.
            dimension_semantics=("parallel",),
            vmem_limit_bytes=_VMEM_LIMIT,
        ),
        cost_estimate=pl.CostEstimate(
            flops=0,
            transcendentals=0,
            bytes_accessed=2 * rows * lane * itemsize,
        ),
    )(flat2d)

    out_flat = jnp.reshape(out2d, (rows * lane,))
    return out_flat[:total] if pad else out_flat


def view_forward(x, *shape, use_pallas_copy=False):
    """Equivalent of torch View(*shape)(x).

    Default path: metadata-only `jnp.reshape` (zero HBM traffic) — the correct
    lowering of `tensor.view` on a contiguous tensor.
    `use_pallas_copy=True`: route the data through the tiled Pallas identity
    copy kernel instead (benchmark / roofline demonstration).
    """
    total = int(np.prod(x.shape))
    target_shape = _resolve_view_shape(total, shape)

    if not use_pallas_copy:
        return jnp.reshape(x, target_shape)   # metadata-only: no data movement

    flat = jnp.reshape(x, (total,))           # metadata-only glue
    out_flat = _pallas_identity_copy(flat)
    return jnp.reshape(out_flat, target_shape)


class View:
    """Drop-in analogue of the PyTorch nn.Module."""

    def __init__(self, *shape, use_pallas_copy=False):
        self.shape = shape
        self.use_pallas_copy = use_pallas_copy

    def __call__(self, x):
        return view_forward(x, *self.shape, use_pallas_copy=self.use_pallas_copy)


if __name__ == "__main__":
    key = jax.random.PRNGKey(0)
    B, C, H, W = 2, 4, 16, 16
    x = jax.random.normal(key, (B, C, H, W), dtype=jnp.float32)

    # Equivalent of View(-1, C * H * W) as used in the SVHN classifier.
    view = View(-1, C * H * W)

    # Default (production) path: metadata-only reshape, zero HBM traffic.
    y_meta = jax.block_until_ready(view(x))

    # Pallas identity-copy path: exercises the tiled copy kernel on TPU.
    y_kern = jax.block_until_ready(
        view_forward(x, -1, C * H * W, use_pallas_copy=True))

    y_ref = jnp.reshape(x, (B, C * H * W))
    assert y_meta.shape == (B, C * H * W), y_meta.shape
    assert y_kern.shape == (B, C * H * W), y_kern.shape
    assert y_kern.dtype == x.dtype
    np.testing.assert_array_equal(np.asarray(y_meta), np.asarray(y_ref))
    np.testing.assert_array_equal(np.asarray(y_kern), np.asarray(y_ref))

    # Ragged / lane-unaligned total exercises the padded tiling path
    # (no single whole-array block is ever emitted).
    x2 = jax.random.normal(jax.random.PRNGKey(0), (3, 5, 7), dtype=jnp.float32)
    y2 = jax.block_until_ready(view_forward(x2, -1, use_pallas_copy=True))
    np.testing.assert_array_equal(np.asarray(y2),
                                  np.asarray(jnp.reshape(x2, (-1,))))

    print("KERNEL_OK")
</pallas_src>

<mosaic_0001>
module attributes {stable_mosaic.version = 11 : i64} {
  func.func @_copy_kernel(%arg0: i32, %arg1: memref<1x2048xf32, #tpu.memory_space<vmem>>, %arg2: memref<1x2048xf32, #tpu.memory_space<vmem>>) attributes {dimension_semantics = [#tpu.dimension_semantics<parallel>], iteration_bounds = array<i64: 1>, scalar_prefetch = 0 : i64, scratch_operands = 0 : i64, tpu.core_type = #tpu.core_type<tc>, window_params = [{transform_indices = @transform_0, window_bounds = array<i64: 1, 2048>}, {transform_indices = @transform_1, window_bounds = array<i64: 1, 2048>}]} {
    %c0 = arith.constant 0 : index
    %c0_0 = arith.constant 0 : index
    %0 = vector.load %arg1[%c0, %c0_0] : memref<1x2048xf32, #tpu.memory_space<vmem>>, vector<1x2048xf32>
    %c0_1 = arith.constant 0 : index
    %c0_2 = arith.constant 0 : index
    %1 = vector.load %arg2[%c0_1, %c0_2] : memref<1x2048xf32, #tpu.memory_space<vmem>>, vector<1x2048xf32>
    tpu.vector_store %arg2[%c0_1, %c0_2], %0 {strides = array<i32>} : memref<1x2048xf32, #tpu.memory_space<vmem>>, vector<1x2048xf32>,
    return
  }
  func.func @transform_0(%arg0: i32) -> (i32, i32) {
    %c0_i32 = arith.constant 0 : i32
    %c0_i32_0 = arith.constant 0 : i32
    return %arg0, %c0_i32 : i32, i32
  }
  func.func @transform_1(%arg0: i32) -> (i32, i32) {
    %c0_i32 = arith.constant 0 : i32
    %c0_i32_0 = arith.constant 0 : i32
    return %arg0, %c0_i32 : i32, i32
  }
}

</mosaic_0001>

<llo_original>
// kernel: tpu_custom_call.1
$region0: #{tpu_custom_call.1}
  #allocation0 [shape = 'u32[]', space=smem, size = 0x4, offset = 0x4, fixed_abs, tag = 'smem constant byte address 0x4 - core index']
  #allocation1 [shape = 'u32[144,128]{1,0:T(1,128)}', space=vmem, size = 0x12000, scoped, tag = 'internal scratch']
  %s0 = inlined_call_operand.hbm [shape: f32[1,2048], index: 0, kind: input, shape index: {}]
  %s1 = inlined_call_operand.hbm [shape: f32[1,2048], index: 1, kind: output, shape index: {}]
  %s2 = sld [smem:[#allocation0]]
  $region18: #{tpu_custom_call.1} parent=0
    _
  %s4 = ssub.s32 1, %s2
  %s5 = scalar_select 0, %s4, %s2
  $region1: #{tpu_custom_call.1} parent=0
    #allocation2 [shape = 'u8[8192]{0}', space=vmem, size = 0x2000, scoped, tag = 'input window, operand 0, single buffered']
    #allocation3 [shape = 's32[1]{0}', space=sflag, size = 0x4, scoped, tag = 'scoped memory for tpu_custom_call.1']
    #allocation4 [shape = 's32[1]{0}', space=sflag, size = 0x4, scoped, tag = 'scoped memory for tpu_custom_call.1']
    #allocation5 [shape = 'u8[8192]{0}', space=vmem, size = 0x2000, scoped, tag = 'output window, operand 0, single buffered']
    %6 = vsyncpa [#allocation3], 0
    %7 = vsyncpa [#allocation4], 0
    // Predicated region
    $region2: #{tpu_custom_call.1} parent=1 // pred_check
      _
    $region3: #{tpu_custom_call.1} parent=1 // pred_check_branch
      %9 = sbr.rel (0) target = $region5
    $region4: #{tpu_custom_call.1} parent=1 // pred_region
      %s11 = ssub.s32 256, 256
      %12 = vsyncadd [#allocation3], %s11
      %s14 = sshll.u32 [#allocation2], 4
      %s15 = int_to_ptr.vmem [resolvable:$true] %s14
      %17 = dma.hbm_to_vmem [thread:$0]  %s0, 256, %s15, [#allocation3]
    $region5: #{tpu_custom_call.1} parent=1 // pred_fallthru
      _
    // Predicated region
    $region6: #{tpu_custom_call.1} parent=1 // pred_check
      _
    $region7: #{tpu_custom_call.1} parent=1 // pred_check_branch
      %19 = sbr.rel (0) target = $region9
    $region8: #{tpu_custom_call.1} parent=1 // pred_region
      %20 = dma.done [#allocation3], 256
    $region9: #{tpu_custom_call.1} parent=1 // pred_fallthru
      _
    %v21 = vld [vmem:[#allocation2] sm:$0xff]
    %v22 = vld [vmem:[#allocation2 + $0x8] sm:$0xff]
    %23 = vst [vmem:[#allocation5] sm:$0xff] %v21
    %24 = vst [vmem:[#allocation5 + $0x8] sm:$0xff] %v22
    // Predicated region
    $region10: #{tpu_custom_call.1} parent=1 // pred_check
      _
    $region11: #{tpu_custom_call.1} parent=1 // pred_check_branch
      %26 = sbr.rel (0) target = $region13
    $region12: #{tpu_custom_call.1} parent=1 // pred_region
      %s28 = ssub.s32 256, 256
      %29 = vsyncadd [#allocation4], %s28
      %s31 = sshll.u32 [#allocation5], 4
      %s32 = int_to_ptr.vmem [resolvable:$true] %s31
      %34 = dma.vmem_to_hbm [thread:$0]  %s32, 256, %s1, [#allocation4]
    $region13: #{tpu_custom_call.1} parent=1 // pred_fallthru
      _
    // Predicated region
    $region14: #{tpu_custom_call.1} parent=1 // pred_check
      _
    $region15: #{tpu_custom_call.1} parent=1 // pred_check_branch
      %36 = sbr.rel (0) target = $region17
    $region16: #{tpu_custom_call.1} parent=1 // pred_region
      %37 = dma.done [#allocation4], 256
    $region17: #{tpu_custom_call.1} parent=1 // pred_fallthru
      _
    %38 = vsyncpa [#allocation3], 1
    %39 = vsyncpa [#allocation4], 1

</llo_original>
